<compile_context>
chip_gen: v6e
topology: v6e:2x2x1
jax: 0.10.0
libtpu: 0.0.40
codegen_flags: <defaults>
</compile_context>

<pallas_src>
import jax
import jax.numpy as jnp
from jax.experimental import pallas as pl
from jax.experimental.pallas import tpu as pltpu

IN_CHANNELS = 64
UPSCALE = 2

# Pixel-tile cap: 2 buffers * (Cin + Cout) * 4 B * 4096 ~= 10.5 MiB (< 16 MiB scoped VMEM on v5e).
_TP_CAP = 4096


def _pick_pixel_tile(hw):
    """Return (pixel_tile, padded_hw).

    The tile is either the full pixel dim (single block per image), a multiple of 128
    that evenly divides it, or (last resort) _TP_CAP with the pixel dim zero-padded.
    This keeps the BlockSpec legal under the (8, 128) rule and the stores lane-dense.
    """
    if hw <= _TP_CAP:
        return hw, hw                      # single block per image ("full dim" rule)
    t = _TP_CAP
    while t >= 128:
        if hw % t == 0:
            return t, hw                   # aligned divisor, no padding
        t -= 128
    hw_pad = ((hw + _TP_CAP - 1) // _TP_CAP) * _TP_CAP
    return _TP_CAP, hw_pad                 # pad pixel dim, slice after the kernel


def _conv1x1_kernel(w_ref, x_ref, o_ref):
    # w_ref: (Cout, Cin)   resident weight (constant block index -> fetched once)
    # x_ref: (Cin, TP)     TP pixels of one image, channel-major (native NCHW layout)
    # o_ref: (Cout, TP)    conv output for those pixels, channel-major
    o_ref[...] = jnp.dot(
        w_ref[...], x_ref[...], preferred_element_type=jnp.float32
    ).astype(o_ref.dtype)


def conv1x1_nchw(x_flat, w2d, *, tp):
    """x_flat: (N, Cin, HWp) f32, w2d: (Cout, Cin) f32 -> (N, Cout, HWp) f32."""
    N, Cin, HWp = x_flat.shape
    Cout = w2d.shape[0]
    assert HWp % tp == 0
    grid = (N, HWp // tp)

    flops = 2 * N * HWp * Cin * Cout
    bytes_accessed = 4 * (N * HWp * Cin + Cin * Cout + N * HWp * Cout)

    return pl.pallas_call(
        _conv1x1_kernel,
        out_shape=jax.ShapeDtypeStruct((N, Cout, HWp), jnp.float32),
        grid_spec=pltpu.PrefetchScalarGridSpec(
            num_scalar_prefetch=0,
            grid=grid,
            in_specs=[
                # Weight: constant block index -> no per-step re-DMA, ~64 KiB VMEM.
                pl.BlockSpec((Cout, Cin), lambda n, p: (0, 0)),
                # Input: one image (squeezed batch dim) x a large pixel tile.
                pl.BlockSpec((None, Cin, tp), lambda n, p: (n, 0, p)),
            ],
            out_specs=pl.BlockSpec((None, Cout, tp), lambda n, p: (n, 0, p)),
        ),
        compiler_params=pltpu.CompilerParams(
            # No reduction axis (Cin fits in one block); both axes shardable across
            # TensorCores (v7x megacore).
            dimension_semantics=("parallel", "parallel"),
        ),
        cost_estimate=pl.CostEstimate(
            flops=flops, transcendentals=0, bytes_accessed=bytes_accessed
        ),
    )(w2d, x_flat)


def upsample_with_pixel_shuffle(x_nchw, weight):
    """
    x_nchw: (N, Cin, H, W) float32
    weight: (Cout, Cin, 1, 1) float32  (PyTorch Conv2d weight layout, Cout = Cin*4)
    returns: (N, Cin, 2H, 2W) float32  (matches PyTorch NCHW output)
    """
    N, Cin, H, W = x_nchw.shape
    Cout = weight.shape[0]
    r = UPSCALE
    C_out = Cout // (r * r)
    HW = H * W

    tp, hw_pad = _pick_pixel_tile(HW)

    # Free contiguous reshape: NCHW stays in its native layout, no transpose pass.
    x_flat = x_nchw.reshape(N, Cin, HW)
    if hw_pad != HW:
        x_flat = jnp.pad(x_flat, ((0, 0), (0, 0), (0, hw_pad - HW)))

    w2d = weight.reshape(Cout, Cin)
    y = conv1x1_nchw(x_flat, w2d, tp=tp)            # (N, Cout, hw_pad)
    if hw_pad != HW:
        y = y[:, :, :HW]

    # PixelShuffle(r): out[n, c, h*r+i, w*r+j] = y[n, c*r*r + i*r + j, h, w]
    y = y.reshape(N, C_out, r, r, H, W)             # (n, c, i, j, h, w)
    y = jnp.transpose(y, (0, 1, 4, 2, 5, 3))        # (n, c, h, i, w, j)
    return y.reshape(N, C_out, H * r, W * r)        # (N, C, 2H, 2W)


if __name__ == "__main__":
    key = jax.random.PRNGKey(0)
    kx, kw = jax.random.split(key)

    N, Cin, H, W = 2, IN_CHANNELS, 16, 16
    Cout = Cin * UPSCALE * UPSCALE

    x = jax.random.normal(kx, (N, Cin, H, W), dtype=jnp.float32)
    # Deterministic "kaiming-ish" init for Conv2d(64, 256, 1, bias=False)
    fan_in = Cin * 1 * 1
    bound = (1.0 / fan_in) ** 0.5
    weight = jax.random.uniform(
        kw, (Cout, Cin, 1, 1), dtype=jnp.float32, minval=-bound, maxval=bound
    )

    fwd = jax.jit(upsample_with_pixel_shuffle)
    out = jax.block_until_ready(fwd(x, weight))

    # Pure-JAX reference for conv-1x1 + PixelShuffle(2) semantics.
    y_ref = jnp.einsum("nchw,oc->nohw", x, weight.reshape(Cout, Cin))
    y_ref = y_ref.reshape(N, Cout // 4, 2, 2, H, W)
    y_ref = jnp.transpose(y_ref, (0, 1, 4, 2, 5, 3)).reshape(N, Cout // 4, H * 2, W * 2)

    assert out.shape == (N, Cin, H * 2, W * 2), out.shape
    assert jnp.allclose(out, y_ref, atol=1e-5, rtol=1e-5)
    print("KERNEL_OK")
</pallas_src>

<mosaic_0001>
module attributes {stable_mosaic.version = 11 : i64} {
  func.func @_conv1x1_kernel(%arg0: i32, %arg1: i32, %arg2: memref<256x64xf32, #tpu.memory_space<vmem>>, %arg3: memref<1x64x256xf32, #tpu.memory_space<vmem>>, %arg4: memref<1x256x256xf32, #tpu.memory_space<vmem>>) attributes {dimension_semantics = [#tpu.dimension_semantics<parallel>, #tpu.dimension_semantics<parallel>], iteration_bounds = array<i64: 2, 1>, scalar_prefetch = 0 : i64, scratch_operands = 0 : i64, tpu.core_type = #tpu.core_type<tc>, window_params = [{pipeline_mode = #tpu.pipeline_mode<synchronous>, transform_indices = @transform_0, window_bounds = array<i64: 256, 64>}, {transform_indices = @transform_1, window_bounds = array<i64: 1, 64, 256>}, {transform_indices = @transform_2, window_bounds = array<i64: 1, 256, 256>}]} {
    %c0 = arith.constant 0 : index
    %c0_0 = arith.constant 0 : index
    %0 = vector.load %arg2[%c0, %c0_0] : memref<256x64xf32, #tpu.memory_space<vmem>>, vector<256x64xf32>
    %c0_1 = arith.constant 0 : index
    %c0_2 = arith.constant 0 : index
    %c0_3 = arith.constant 0 : index
    %1 = vector.load %arg3[%c0_1, %c0_2, %c0_3] : memref<1x64x256xf32, #tpu.memory_space<vmem>>, vector<1x64x256xf32>
    %2 = vector.shape_cast %1 : vector<1x64x256xf32> to vector<64x256xf32>
    %cst = arith.constant dense<0.000000e+00> : vector<256x256xf32>
    %3 = tpu.matmul %0, %2, %cst {dimension_numbers = #tpu.dot_dimension_numbers<[1], [0], [0], [1], [0, 0, 1, 1], [], []>} : vector<256x64xf32>, vector<64x256xf32>, vector<256x256xf32> -> vector<256x256xf32>
    %c0_4 = arith.constant 0 : index
    %c0_5 = arith.constant 0 : index
    %c0_6 = arith.constant 0 : index
    %4 = vector.load %arg4[%c0_4, %c0_5, %c0_6] : memref<1x256x256xf32, #tpu.memory_space<vmem>>, vector<1x256x256xf32>
    %5 = vector.shape_cast %4 : vector<1x256x256xf32> to vector<256x256xf32>
    %6 = vector.shape_cast %3 : vector<256x256xf32> to vector<1x256x256xf32>
    tpu.vector_store %arg4[%c0_4, %c0_5, %c0_6], %6 {strides = array<i32>} : memref<1x256x256xf32, #tpu.memory_space<vmem>>, vector<1x256x256xf32>,
    return
  }
  func.func @transform_0(%arg0: i32, %arg1: i32) -> (i32, i32) {
    %c0_i32 = arith.constant 0 : i32
    %c0_i32_0 = arith.constant 0 : i32
    %c0_i32_1 = arith.constant 0 : i32
    return %c0_i32, %c0_i32_0 : i32, i32
  }
  func.func @transform_1(%arg0: i32, %arg1: i32) -> (i32, i32, i32) {
    %c0_i32 = arith.constant 0 : i32
    %c0_i32_0 = arith.constant 0 : i32
    return %arg0, %c0_i32, %arg1 : i32, i32, i32
  }
  func.func @transform_2(%arg0: i32, %arg1: i32) -> (i32, i32, i32) {
    %c0_i32 = arith.constant 0 : i32
    %c0_i32_0 = arith.constant 0 : i32
    return %arg0, %c0_i32, %arg1 : i32, i32, i32
  }
}

</mosaic_0001>

<llo_original>
// kernel: upsample_with_pixel_shuffle.1
$region0: #{upsample_with_pixel_shuffle.1}
  #allocation0 [shape = 'u32[]', space=smem, size = 0x4, offset = 0x4, fixed_abs, tag = 'smem constant byte address 0x4 - core index']
  #allocation1 [shape = 'u32[144,128]{1,0:T(1,128)}', space=vmem, size = 0x12000, scoped, tag = 'internal scratch']
  %s0 = inlined_call_operand.vmem [shape: f32[256,64], index: 0, kind: input, shape index: {}]
  %s1 = inlined_call_operand.vmem [shape: f32[2,64,256], index: 1, kind: input, shape index: {}]
  %s2 = inlined_call_operand.vmem [shape: f32[2,256,256], index: 2, kind: output, shape index: {}]
  %s3 = sld [smem:[#allocation0]]
  $region41: #{upsample_with_pixel_shuffle.1} parent=0
    _
  %s5 = ssub.s32 1, %s3
  %s6 = scalar_select 0, %s5, %s3
  loop: start=0, step=1, limit=4
  $region2: #{upsample_with_pixel_shuffle.1} parent=0 // loop_pre_header
    _
  $region3: #{upsample_with_pixel_shuffle.1} parent=0 // loop_header
    %s8 = sphi 0, %s12
    %p9 = scmp.ge.s32.totalorder %s8, 4
    %s15 = sphi 0, %s27
    %s16 = sphi 0, %s23
    %s17 = sphi 0, %s15
    %s18 = sphi 0, %s16
    %s19 = sphi 0, %s17
    %s20 = sphi 0, %s18
    %s28 = sphi 0, %s28
    %s30 = sphi 0, %s28
    %s31 = sphi 0, %s30
    %s45 = sphi 0, %s31
    %s53 = sphi 0, %s55
    %s56 = sphi 0, %s53
    %s57 = sphi 0, %s56
    %s73 = sphi 0, %s57
    %s81 = sphi 0, %s83
    %s84 = sphi 0, %s81
    %s85 = sphi 0, %s84
    %s101 = sphi 0, %s85
  $region4: #{upsample_with_pixel_shuffle.1} parent=0 // loop_header_branch
    %11 = sbr.rel (%p9) target = $region8
  $region5: #{upsample_with_pixel_shuffle.1} parent=0 // loop_body
    %s13 = ssub.s32 %s8, 1
    %s14 = ssub.s32 %s8, 2
    %s21 = sadd.s32 1, %s16
    %p22 = scmp.ge.s32.totalorder %s21, 1
    %s23 = scalar_select %p22, 0, %s21
    %s24 = sadd.s32 1, %s15
    %s25 = scalar_select %p22, %s24, %s15
    %p26 = scmp.ge.s32.totalorder %s25, 2
    %s27 = scalar_select %p26, 0, %s25
    %s29 = sadd.s32 %s28, 1
    %p32 = scmp.eq.s32.totalorder %s8, 1
    %p33 = scmp.ne.s32.totalorder %s28, %s30
    %p34 = scmp.eq.s32.totalorder %s8, 0
    %p35 = por %p33, %p34
    %p36 = scmp.ne.s32.totalorder %s28, %s30
    %p37 = scmp.eq.s32.totalorder %s13, 1
    %p38 = por %p36, %p37
    %p39 = scmp.ne.s32.totalorder %s30, %s31
    %p40 = scmp.eq.s32.totalorder %s13, 0
    %p41 = por %p39, %p40
    %p42 = scmp.ne.s32.totalorder %s30, %s31
    %p43 = scmp.eq.s32.totalorder %s14, 1
    %p44 = por %p42, %p43
    %p46 = scmp.ne.s32.totalorder %s31, %s45
    %p47 = scmp.eq.s32.totalorder %s14, 0
    %p48 = por %p46, %p47
    %s49 = ssub.s32 %s15, %s27
    %s50 = ssub.s32 %s16, %s23
    %s51 = sor.u32 %s49, %s50
    %p52 = scmp.eq.s32.totalorder %s51, 0
    %s54 = sadd.s32 %s53, 1
    %s55 = scalar_select %p52, %s53, %s54
    %p58 = pneg %p52
    %p59 = scmp.eq.s32.totalorder %s8, 1
    %p60 = por %p58, %p59
    %p61 = scmp.ne.s32.totalorder %s53, %s56
    %p62 = scmp.eq.s32.totalorder %s8, 0
    %p63 = por %p61, %p62
    %p64 = scmp.ne.s32.totalorder %s53, %s56
    %p65 = scmp.eq.s32.totalorder %s13, 1
    %p66 = por %p64, %p65
    %p67 = scmp.ne.s32.totalorder %s56, %s57
    %p68 = scmp.eq.s32.totalorder %s13, 0
    %p69 = por %p67, %p68
    %p70 = scmp.ne.s32.totalorder %s56, %s57
    %p71 = scmp.eq.s32.totalorder %s14, 1
    %p72 = por %p70, %p71
    %p74 = scmp.ne.s32.totalorder %s57, %s73
    %p75 = scmp.eq.s32.totalorder %s14, 0
    %p76 = por %p74, %p75
    %s77 = ssub.s32 %s15, %s27
    %s78 = ssub.s32 %s16, %s23
    %s79 = sor.u32 %s77, %s78
    %p80 = scmp.eq.s32.totalorder %s79, 0
    %s82 = sadd.s32 %s81, 1
    %s83 = scalar_select %p80, %s81, %s82
    %p86 = pneg %p80
    %p87 = scmp.eq.s32.totalorder %s8, 1
    %p88 = por %p86, %p87
    %p89 = scmp.ne.s32.totalorder %s81, %s84
    %p90 = scmp.eq.s32.totalorder %s8, 0
    %p91 = por %p89, %p90
    %p92 = scmp.ne.s32.totalorder %s81, %s84
    %p93 = scmp.eq.s32.totalorder %s13, 1
    %p94 = por %p92, %p93
    %p95 = scmp.ne.s32.totalorder %s84, %s85
    %p96 = scmp.eq.s32.totalorder %s13, 0
    %p97 = por %p95, %p96
    %p98 = scmp.ne.s32.totalorder %s84, %s85
    %p99 = scmp.eq.s32.totalorder %s14, 1
    %p100 = por %p98, %p99
    %p102 = scmp.ne.s32.totalorder %s85, %s101
    %p103 = scmp.eq.s32.totalorder %s14, 0
    %p104 = por %p102, %p103
    %p105 = scmp.le.s32.totalorder 1, %s8
    %p106 = scmp.lt.s32.totalorder %s8, 3
    %p107 = pnand %p105, %p106
    %p108 = pneg %p107
    // Predicated region
    $region9: #{upsample_with_pixel_shuffle.1} parent=5 // pred_check
      _
    $region10: #{upsample_with_pixel_shuffle.1} parent=5 // pred_check_branch
      %110 = sbr.rel (%p107) target = $region12
    $region11: #{upsample_with_pixel_shuffle.1} parent=5 // pred_region
      %s111 = ssub.s32 %s8, 1
      // Predicated region
      $region13: #{upsample_with_pixel_shuffle.1} parent=11 // pred_check
        %p112 = pneg %p41
      $region14: #{upsample_with_pixel_shuffle.1} parent=11 // pred_check_branch
        %114 = sbr.rel (%p112) target = $region16
      $region15: #{upsample_with_pixel_shuffle.1} parent=11 // pred_region
        _
      $region16: #{upsample_with_pixel_shuffle.1} parent=11 // pred_fallthru
        _
    $region12: #{upsample_with_pixel_shuffle.1} parent=5 // pred_fallthru
      _
    %p115 = scmp.lt.s32.totalorder %s8, 2
    // Predicated region
    $region17: #{upsample_with_pixel_shuffle.1} parent=5 // pred_check
      %p116 = pneg %p115
    $region18: #{upsample_with_pixel_shuffle.1} parent=5 // pred_check_branch
      %118 = sbr.rel (%p116) target = $region20
    $region19: #{upsample_with_pixel_shuffle.1} parent=5 // pred_region
      // Predicated region
      $region21: #{upsample_with_pixel_shuffle.1} parent=19 // pred_check
        %p119 = pneg %p63
      $region22: #{upsample_with_pixel_shuffle.1} parent=19 // pred_check_branch
        %121 = sbr.rel (%p119) target = $region24
      $region23: #{upsample_with_pixel_shuffle.1} parent=19 // pred_region
        %s122 = smul.u32 2, %s16
        %p123 = scmp.lt.s32.totalorder %s15, 1
        %s124 = scalar_select %p123, %s15, 1
        %p125 = scmp.lt.s32.totalorder %s122, 1
        %s126 = scalar_select %p125, %s122, 1
        %s127 = smul.addr %s124, 16
        %s128 = sadd.s32 %s126, %s127
        %s129 = smul.addr %s128, 8
        %s130 = scalar_lea.vmem %s1, %s129
        %s131 = smul.u32 2, %s16
      $region24: #{upsample_with_pixel_shuffle.1} parent=19 // pred_fallthru
        _
    $region20: #{upsample_with_pixel_shuffle.1} parent=5 // pred_fallthru
      _
    %p132 = scmp.le.s32.totalorder 1, %s8
    %p133 = scmp.lt.s32.totalorder %s8, 3
    %p134 = pnand %p132, %p133
    %p135 = pneg %p134
    // Predicated region
    $region25: #{upsample_with_pixel_shuffle.1} parent=5 // pred_check
      _
    $region26: #{upsample_with_pixel_shuffle.1} parent=5 // pred_check_branch
      %137 = sbr.rel (%p134) target = $region28
    $region27: #{upsample_with_pixel_shuffle.1} parent=5 // pred_region
      %s138 = ssub.s32 %s8, 1
      %p139 = pneg %p41
      %p140 = pneg %p38
      %s141 = smul.u32 2, %s18
      %p142 = scmp.lt.s32.totalorder %s17, 1
      %s143 = scalar_select %p142, %s17, 1
      %p144 = scmp.lt.s32.totalorder %s141, 1
      %s145 = scalar_select %p144, %s141, 1
      %s146 = smul.addr %s143, 16
      %s147 = sadd.s32 %s145, %s146
      %s148 = smul.addr %s147, 8
      %s149 = scalar_lea.vmem %s1, %s148
      %p150 = pneg %p69
      %p151 = pneg %p66
      %p152 = pneg %p97
      %p153 = pneg %p94
      %s154 = smul.u32 2, %s18
      %p155 = scmp.lt.s32.totalorder %s17, 1
      %s156 = scalar_select %p155, %s17, 1
      %p157 = scmp.lt.s32.totalorder %s154, 1
      %s158 = scalar_select %p157, %s154, 1
      %s159 = smul.addr %s156, 64
      %s160 = sadd.s32 %s158, %s159
      %s161 = smul.addr %s160, 8
      %s162 = scalar_lea.vmem %s2, %s161
      %s163 = smul.u32 2, %s18
      %p164 = scmp.lt.s32.totalorder %s17, 1
      %s165 = scalar_select %p164, %s17, 1
      %p166 = scmp.lt.s32.totalorder %s163, 1
      %s167 = scalar_select %p166, %s163, 1
      %s168 = smul.addr %s165, 16
      %s169 = sadd.s32 %s167, %s168
      %s170 = smul.addr %s169, 8
      %s171 = scalar_lea.vmem %s1, %s170
      %s172 = smul.u32 2, %s18
      %s173 = smul.u32 2, %s18
      %p174 = scmp.lt.s32.totalorder %s17, 1
      %s175 = scalar_select %p174, %s17, 1
      %p176 = scmp.lt.s32.totalorder %s173, 1
      %s177 = scalar_select %p176, %s173, 1
      %s178 = smul.addr %s175, 64
      %s179 = sadd.s32 %s177, %s178
      %s180 = smul.addr %s179, 8
      %s181 = scalar_lea.vmem %s2, %s180
      %s182 = smul.u32 2, %s18
      %v183 = vld [vmem:[%s0] sm:$0xff]
      %v184 = vld [vmem:[%s0 + $0x8] sm:$0xff]
      %v185 = vld [vmem:[%s0 + $0x10] sm:$0xff]
      %v186 = vld [vmem:[%s0 + $0x18] sm:$0xff]
      %v187 = vld [vmem:[%s0 + $0x20] sm:$0xff]
      %v188 = vld [vmem:[%s0 + $0x28] sm:$0xff]
      %v189 = vld [vmem:[%s0 + $0x30] sm:$0xff]
      %v190 = vld [vmem:[%s0 + $0x38] sm:$0xff]
      %v191 = vld [vmem:[%s0 + $0x40] sm:$0xff]
      %v192 = vld [vmem:[%s0 + $0x48] sm:$0xff]
      %v193 = vld [vmem:[%s0 + $0x50] sm:$0xff]
      %v194 = vld [vmem:[%s0 + $0x58] sm:$0xff]
      %v195 = vld [vmem:[%s0 + $0x60] sm:$0xff]
      %v196 = vld [vmem:[%s0 + $0x68] sm:$0xff]
      %v197 = vld [vmem:[%s0 + $0x70] sm:$0xff]
      %v198 = vld [vmem:[%s0 + $0x78] sm:$0xff]
      %v199 = vld [vmem:[%s0 + $0x80] sm:$0xff]
      %v200 = vld [vmem:[%s0 + $0x88] sm:$0xff]
      %v201 = vld [vmem:[%s0 + $0x90] sm:$0xff]
      %v202 = vld [vmem:[%s0 + $0x98] sm:$0xff]
      %v203 = vld [vmem:[%s0 + $0xa0] sm:$0xff]
      %v204 = vld [vmem:[%s0 + $0xa8] sm:$0xff]
      %v205 = vld [vmem:[%s0 + $0xb0] sm:$0xff]
      %v206 = vld [vmem:[%s0 + $0xb8] sm:$0xff]
      %v207 = vld [vmem:[%s0 + $0xc0] sm:$0xff]
      %v208 = vld [vmem:[%s0 + $0xc8] sm:$0xff]
      %v209 = vld [vmem:[%s0 + $0xd0] sm:$0xff]
      %v210 = vld [vmem:[%s0 + $0xd8] sm:$0xff]
      %v211 = vld [vmem:[%s0 + $0xe0] sm:$0xff]
      %v212 = vld [vmem:[%s0 + $0xe8] sm:$0xff]
      %v213 = vld [vmem:[%s0 + $0xf0] sm:$0xff]
      %v214 = vld [vmem:[%s0 + $0xf8] sm:$0xff]
      %v215 = vld [vmem:[%s171] sm:$0xff]
      %v216 = vld [vmem:[%s171 + $0x8] sm:$0xff]
      %v217 = vld [vmem:[%s171 + $0x10] sm:$0xff]
      %v218 = vld [vmem:[%s171 + $0x18] sm:$0xff]
      %v219 = vld [vmem:[%s171 + $0x20] sm:$0xff]
      %v220 = vld [vmem:[%s171 + $0x28] sm:$0xff]
      %v221 = vld [vmem:[%s171 + $0x30] sm:$0xff]
      %v222 = vld [vmem:[%s171 + $0x38] sm:$0xff]
      %v223 = vld [vmem:[%s171 + $0x40] sm:$0xff]
      %v224 = vld [vmem:[%s171 + $0x48] sm:$0xff]
      %v225 = vld [vmem:[%s171 + $0x50] sm:$0xff]
      %v226 = vld [vmem:[%s171 + $0x58] sm:$0xff]
      %v227 = vld [vmem:[%s171 + $0x60] sm:$0xff]
      %v228 = vld [vmem:[%s171 + $0x68] sm:$0xff]
      %v229 = vld [vmem:[%s171 + $0x70] sm:$0xff]
      %v230 = vld [vmem:[%s171 + $0x78] sm:$0xff]
      %vm231 = vcmask 523264
      %v233 = vsel %vm231, %v183, 0
      %v236 = vsel %vm231, %v184, 0
      %v239 = vsel %vm231, %v185, 0
      %v242 = vsel %vm231, %v186, 0
      %v245 = vsel %vm231, %v187, 0
      %v248 = vsel %vm231, %v188, 0
      %v251 = vsel %vm231, %v189, 0
      %v254 = vsel %vm231, %v190, 0
      %v257 = vsel %vm231, %v191, 0
      %v260 = vsel %vm231, %v192, 0
      %v263 = vsel %vm231, %v193, 0
      %v266 = vsel %vm231, %v194, 0
      %v269 = vsel %vm231, %v195, 0
      %v272 = vsel %vm231, %v196, 0
      %v275 = vsel %vm231, %v197, 0
      %v278 = vsel %vm231, %v198, 0
      %v281 = vsel %vm231, %v199, 0
      %v284 = vsel %vm231, %v200, 0
      %v287 = vsel %vm231, %v201, 0
      %v290 = vsel %vm231, %v202, 0
      %v293 = vsel %vm231, %v203, 0
      %v296 = vsel %vm231, %v204, 0
      %v299 = vsel %vm231, %v205, 0
      %v302 = vsel %vm231, %v206, 0
      %v305 = vsel %vm231, %v207, 0
      %v308 = vsel %vm231, %v208, 0
      %v311 = vsel %vm231, %v209, 0
      %v314 = vsel %vm231, %v210, 0
      %v317 = vsel %vm231, %v211, 0
      %v320 = vsel %vm231, %v212, 0
      %v323 = vsel %vm231, %v213, 0
      %v326 = vsel %vm231, %v214, 0
      %328 = vmatprep.subr.mxu0 0.0
      %329 = vmatpush1.msra.mxu0 0.0
      %330 = vmatprep.subr.mxu0 0.0
      %331 = vmatpush1.msra.mxu0 0.0
      %332 = vmatprep.subr.mxu0 0.0
      %333 = vmatpush1.msra.mxu0 0.0
      %334 = vmatprep.subr.mxu0 0.0
      %335 = vmatpush1.msra.mxu0 0.0
      %336 = vmatprep.subr.mxu0 0.0
      %337 = vmatpush1.msra.mxu0 0.0
      %338 = vmatprep.subr.mxu0 0.0
      %339 = vmatpush1.msra.mxu0 0.0
      %340 = vmatprep.subr.mxu0 0.0
      %341 = vmatpush1.msra.mxu0 0.0
      %342 = vmatprep.subr.mxu0 0.0
      %343 = vmatpush1.msra.mxu0 0.0
      %344 = vmatprep.subr.mxu0 %v230
      %345 = vmatpush1.msra.mxu0 %v229
      %346 = vmatprep.subr.mxu0 %v228
      %347 = vmatpush1.msra.mxu0 %v227
      %348 = vmatprep.subr.mxu0 %v226
      %349 = vmatpush1.msra.mxu0 %v225
      %350 = vmatprep.subr.mxu0 %v224
      %351 = vmatpush1.msra.mxu0 %v223
      %352 = vmatprep.subr.mxu0 %v222
      %353 = vmatpush1.msra.mxu0 %v221
      %354 = vmatprep.subr.mxu0 %v220
      %355 = vmatpush1.msra.mxu0 %v219
      %356 = vmatprep.subr.mxu0 %v218
      %357 = vmatpush1.msra.mxu0 %v217
      %358 = vmatprep.subr.mxu0 %v216
      %359 = vmatpush1.msra.mxu0 %v215
      %360 = vmatprep.subr.mxu0 0.0
      %361 = vmatpush2.msra.mxu0 0.0
      %362 = vmatprep.subr.mxu0 0.0
      %363 = vmatpush2.msra.mxu0 0.0
      %364 = vmatprep.subr.mxu0 0.0
      %365 = vmatpush2.msra.mxu0 0.0
      %366 = vmatprep.subr.mxu0 0.0
      %367 = vmatpush2.msra.mxu0 0.0
      %368 = vmatprep.subr.mxu0 0.0
      %369 = vmatpush2.msra.mxu0 0.0
      %370 = vmatprep.subr.mxu0 0.0
      %371 = vmatpush2.msra.mxu0 0.0
      %372 = vmatprep.subr.mxu0 0.0
      %373 = vmatpush2.msra.mxu0 0.0
      %374 = vmatprep.subr.mxu0 0.0
      %375 = vmatpush2.msra.mxu0 0.0
      %376 = vmatprep.subr.mxu0 0.0
      %377 = vmatpush2.msra.mxu0 0.0
      %378 = vmatprep.subr.mxu0 0.0
      %379 = vmatpush2.msra.mxu0 0.0
      %380 = vmatprep.subr.mxu0 0.0
      %381 = vmatpush2.msra.mxu0 0.0
      %382 = vmatprep.subr.mxu0 0.0
      %383 = vmatpush2.msra.mxu0 0.0
      %384 = vmatprep.subr.mxu0 0.0
      %385 = vmatpush2.msra.mxu0 0.0
      %386 = vmatprep.subr.mxu0 0.0
      %387 = vmatpush2.msra.mxu0 0.0
      %388 = vmatprep.subr.mxu0 0.0
      %389 = vmatpush2.msra.mxu0 0.0
      %390 = vmatprep.subr.mxu0 0.0
      %391 = vmatpush2.msra.mxu0 0.0
      %392 = vmatprep.mubr.f32.mxu0 0.0
      %393 = vmatmul.mubr.f32.gmra.mxu0 %v233
      %v394 = vpop.f32.mrf.mxu0
      %v395 = vadd.f32 0.0, %v394
      %v396 = vpop.f32.mrf.mxu0
      %v397 = vadd.f32 0.0, %v396
      %398 = vmatprep.mubr.f32.mxu0 0.0
      %399 = vmatmul.mubr.f32.gmra.mxu0 %v236
      %v400 = vpop.f32.mrf.mxu0
      %v401 = vadd.f32 0.0, %v400
      %v402 = vpop.f32.mrf.mxu0
      %v403 = vadd.f32 0.0, %v402
      %404 = vmatprep.mubr.f32.mxu0 0.0
      %405 = vmatmul.mubr.f32.gmra.mxu0 %v239
      %v406 = vpop.f32.mrf.mxu0
      %v407 = vadd.f32 0.0, %v406
      %v408 = vpop.f32.mrf.mxu0
      %v409 = vadd.f32 0.0, %v408
      %410 = vmatprep.mubr.f32.mxu0 0.0
      %411 = vmatmul.mubr.f32.gmra.mxu0 %v242
      %v412 = vpop.f32.mrf.mxu0
      %v413 = vadd.f32 0.0, %v412
      %v414 = vpop.f32.mrf.mxu0
      %v415 = vadd.f32 0.0, %v414
      %416 = vmatprep.mubr.f32.mxu0 0.0
      %417 = vmatmul.mubr.f32.gmra.mxu0 %v245
      %v418 = vpop.f32.mrf.mxu0
      %v419 = vadd.f32 0.0, %v418
      %v420 = vpop.f32.mrf.mxu0
      %v421 = vadd.f32 0.0, %v420
      %422 = vmatprep.mubr.f32.mxu0 0.0
      %423 = vmatmul.mubr.f32.gmra.mxu0 %v248
      %v424 = vpop.f32.mrf.mxu0
      %v425 = vadd.f32 0.0, %v424
      %v426 = vpop.f32.mrf.mxu0
      %v427 = vadd.f32 0.0, %v426
      %428 = vmatprep.mubr.f32.mxu0 0.0
      %429 = vmatmul.mubr.f32.gmra.mxu0 %v251
      %v430 = vpop.f32.mrf.mxu0
      %v431 = vadd.f32 0.0, %v430
      %v432 = vpop.f32.mrf.mxu0
      %v433 = vadd.f32 0.0, %v432
      %434 = vmatprep.mubr.f32.mxu0 0.0
      %435 = vmatmul.mubr.f32.gmra.mxu0 %v254
      %v436 = vpop.f32.mrf.mxu0
      %v437 = vadd.f32 0.0, %v436
      %v438 = vpop.f32.mrf.mxu0
      %v439 = vadd.f32 0.0, %v438
      %440 = vmatprep.mubr.f32.mxu0 0.0
      %441 = vmatmul.mubr.f32.gmra.mxu0 %v257
      %v442 = vpop.f32.mrf.mxu0
      %v443 = vadd.f32 0.0, %v442
      %v444 = vpop.f32.mrf.mxu0
      %v445 = vadd.f32 0.0, %v444
      %446 = vmatprep.mubr.f32.mxu0 0.0
      %447 = vmatmul.mubr.f32.gmra.mxu0 %v260
      %v448 = vpop.f32.mrf.mxu0
      %v449 = vadd.f32 0.0, %v448
      %v450 = vpop.f32.mrf.mxu0
      %v451 = vadd.f32 0.0, %v450
      %452 = vmatprep.mubr.f32.mxu0 0.0
      %453 = vmatmul.mubr.f32.gmra.mxu0 %v263
      %v454 = vpop.f32.mrf.mxu0
      %v455 = vadd.f32 0.0, %v454
      %v456 = vpop.f32.mrf.mxu0
      %v457 = vadd.f32 0.0, %v456
      %458 = vmatprep.mubr.f32.mxu0 0.0
      %459 = vmatmul.mubr.f32.gmra.mxu0 %v266
      %v460 = vpop.f32.mrf.mxu0
      %v461 = vadd.f32 0.0, %v460
      %v462 = vpop.f32.mrf.mxu0
      %v463 = vadd.f32 0.0, %v462
      %464 = vmatprep.mubr.f32.mxu0 0.0
      %465 = vmatmul.mubr.f32.gmra.mxu0 %v269
      %v466 = vpop.f32.mrf.mxu0
      %v467 = vadd.f32 0.0, %v466
      %v468 = vpop.f32.mrf.mxu0
      %v469 = vadd.f32 0.0, %v468
      %470 = vmatprep.mubr.f32.mxu0 0.0
      %471 = vmatmul.mubr.f32.gmra.mxu0 %v272
      %v472 = vpop.f32.mrf.mxu0
      %v473 = vadd.f32 0.0, %v472
      %v474 = vpop.f32.mrf.mxu0
      %v475 = vadd.f32 0.0, %v474
      %476 = vmatprep.mubr.f32.mxu0 0.0
      %477 = vmatmul.mubr.f32.gmra.mxu0 %v275
      %v478 = vpop.f32.mrf.mxu0
      %v479 = vadd.f32 0.0, %v478
      %v480 = vpop.f32.mrf.mxu0
      %v481 = vadd.f32 0.0, %v480
      %482 = vmatprep.mubr.f32.mxu0 0.0
      %483 = vmatmul.mubr.f32.gmra.mxu0 %v278
      %v484 = vpop.f32.mrf.mxu0
      %v485 = vadd.f32 0.0, %v484
      %v486 = vpop.f32.mrf.mxu0
      %v487 = vadd.f32 0.0, %v486
      %488 = vmatprep.mubr.f32.mxu0 0.0
      %489 = vmatmul.mubr.f32.gmra.mxu0 %v281
      %v490 = vpop.f32.mrf.mxu0
      %v491 = vadd.f32 0.0, %v490
      %v492 = vpop.f32.mrf.mxu0
      %v493 = vadd.f32 0.0, %v492
      %494 = vmatprep.mubr.f32.mxu0 0.0
      %495 = vmatmul.mubr.f32.gmra.mxu0 %v284
      %v496 = vpop.f32.mrf.mxu0
      %v497 = vadd.f32 0.0, %v496
      %v498 = vpop.f32.mrf.mxu0
      %v499 = vadd.f32 0.0, %v498
      %500 = vmatprep.mubr.f32.mxu0 0.0
      %501 = vmatmul.mubr.f32.gmra.mxu0 %v287
      %v502 = vpop.f32.mrf.mxu0
      %v503 = vadd.f32 0.0, %v502
      %v504 = vpop.f32.mrf.mxu0
      %v505 = vadd.f32 0.0, %v504
      %506 = vmatprep.mubr.f32.mxu0 0.0
      %507 = vmatmul.mubr.f32.gmra.mxu0 %v290
      %v508 = vpop.f32.mrf.mxu0
      %v509 = vadd.f32 0.0, %v508
      %v510 = vpop.f32.mrf.mxu0
      %v511 = vadd.f32 0.0, %v510
      %512 = vmatprep.mubr.f32.mxu0 0.0
      %513 = vmatmul.mubr.f32.gmra.mxu0 %v293
      %v514 = vpop.f32.mrf.mxu0
      %v515 = vadd.f32 0.0, %v514
      %v516 = vpop.f32.mrf.mxu0
      %v517 = vadd.f32 0.0, %v516
      %518 = vmatprep.mubr.f32.mxu0 0.0
      %519 = vmatmul.mubr.f32.gmra.mxu0 %v296
      %v520 = vpop.f32.mrf.mxu0
      %v521 = vadd.f32 0.0, %v520
      %v522 = vpop.f32.mrf.mxu0
      %v523 = vadd.f32 0.0, %v522
      %524 = vmatprep.mubr.f32.mxu0 0.0
      %525 = vmatmul.mubr.f32.gmra.mxu0 %v299
      %v526 = vpop.f32.mrf.mxu0
      %v527 = vadd.f32 0.0, %v526
      %v528 = vpop.f32.mrf.mxu0
      %v529 = vadd.f32 0.0, %v528
      %530 = vmatprep.mubr.f32.mxu0 0.0
      %531 = vmatmul.mubr.f32.gmra.mxu0 %v302
      %v532 = vpop.f32.mrf.mxu0
      %v533 = vadd.f32 0.0, %v532
      %v534 = vpop.f32.mrf.mxu0
      %v535 = vadd.f32 0.0, %v534
      %536 = vmatprep.mubr.f32.mxu0 0.0
      %537 = vmatmul.mubr.f32.gmra.mxu0 %v305
      %v538 = vpop.f32.mrf.mxu0
      %v539 = vadd.f32 0.0, %v538
      %v540 = vpop.f32.mrf.mxu0
      %v541 = vadd.f32 0.0, %v540
      %542 = vmatprep.mubr.f32.mxu0 0.0
      %543 = vmatmul.mubr.f32.gmra.mxu0 %v308
      %v544 = vpop.f32.mrf.mxu0
      %v545 = vadd.f32 0.0, %v544
      %v546 = vpop.f32.mrf.mxu0
      %v547 = vadd.f32 0.0, %v546
      %548 = vmatprep.mubr.f32.mxu0 0.0
      %549 = vmatmul.mubr.f32.gmra.mxu0 %v311
      %v550 = vpop.f32.mrf.mxu0
      %v551 = vadd.f32 0.0, %v550
      %v552 = vpop.f32.mrf.mxu0
      %v553 = vadd.f32 0.0, %v552
      %554 = vmatprep.mubr.f32.mxu0 0.0
      %555 = vmatmul.mubr.f32.gmra.mxu0 %v314
      %v556 = vpop.f32.mrf.mxu0
      %v557 = vadd.f32 0.0, %v556
      %v558 = vpop.f32.mrf.mxu0
      %v559 = vadd.f32 0.0, %v558
      %560 = vmatprep.mubr.f32.mxu0 0.0
      %561 = vmatmul.mubr.f32.gmra.mxu0 %v317
      %v562 = vpop.f32.mrf.mxu0
      %v563 = vadd.f32 0.0, %v562
      %v564 = vpop.f32.mrf.mxu0
      %v565 = vadd.f32 0.0, %v564
      %566 = vmatprep.mubr.f32.mxu0 0.0
      %567 = vmatmul.mubr.f32.gmra.mxu0 %v320
      %v568 = vpop.f32.mrf.mxu0
      %v569 = vadd.f32 0.0, %v568
      %v570 = vpop.f32.mrf.mxu0
      %v571 = vadd.f32 0.0, %v570
      %572 = vmatprep.mubr.f32.mxu0 0.0
      %573 = vmatmul.mubr.f32.gmra.mxu0 %v323
      %v574 = vpop.f32.mrf.mxu0
      %v575 = vadd.f32 0.0, %v574
      %v576 = vpop.f32.mrf.mxu0
      %v577 = vadd.f32 0.0, %v576
      %578 = vmatprep.mubr.f32.mxu0 0.0
      %579 = vmatmul.mubr.f32.gmra.mxu0 %v326
      %v580 = vpop.f32.mrf.mxu0
      %v581 = vadd.f32 0.0, %v580
      %v582 = vpop.f32.mrf.mxu0
      %v583 = vadd.f32 0.0, %v582
      %584 = vdwg.mxu0
      %585 = vst [vmem:[%s181] sm:$0xff] %v395
      %586 = vst [vmem:[%s181 + $0x8] sm:$0xff] %v397
      %587 = vst [vmem:[%s181 + $0x10] sm:$0xff] %v401
      %588 = vst [vmem:[%s181 + $0x18] sm:$0xff] %v403
      %589 = vst [vmem:[%s181 + $0x20] sm:$0xff] %v407
      %590 = vst [vmem:[%s181 + $0x28] sm:$0xff] %v409
      %591 = vst [vmem:[%s181 + $0x30] sm:$0xff] %v413
      %592 = vst [vmem:[%s181 + $0x38] sm:$0xff] %v415
      %593 = vst [vmem:[%s181 + $0x40] sm:$0xff] %v419
      %594 = vst [vmem:[%s181 + $0x48] sm:$0xff] %v421
      %595 = vst [vmem:[%s181 + $0x50] sm:$0xff] %v425
      %596 = vst [vmem:[%s181 + $0x58] sm:$0xff] %v427
      %597 = vst [vmem:[%s181 + $0x60] sm:$0xff] %v431
      %598 = vst [vmem:[%s181 + $0x68] sm:$0xff] %v433
      %599 = vst [vmem:[%s181 + $0x70] sm:$0xff] %v437
      %600 = vst [vmem:[%s181 + $0x78] sm:$0xff] %v439
      %601 = vst [vmem:[%s181 + $0x80] sm:$0xff] %v443
      %602 = vst [vmem:[%s181 + $0x88] sm:$0xff] %v445
      %603 = vst [vmem:[%s181 + $0x90] sm:$0xff] %v449
      %604 = vst [vmem:[%s181 + $0x98] sm:$0xff] %v451
      %605 = vst [vmem:[%s181 + $0xa0] sm:$0xff] %v455
      %606 = vst [vmem:[%s181 + $0xa8] sm:$0xff] %v457
      %607 = vst [vmem:[%s181 + $0xb0] sm:$0xff] %v461
      %608 = vst [vmem:[%s181 + $0xb8] sm:$0xff] %v463
      %609 = vst [vmem:[%s181 + $0xc0] sm:$0xff] %v467
      %610 = vst [vmem:[%s181 + $0xc8] sm:$0xff] %v469
      %611 = vst [vmem:[%s181 + $0xd0] sm:$0xff] %v473
      %612 = vst [vmem:[%s181 + $0xd8] sm:$0xff] %v475
      %613 = vst [vmem:[%s181 + $0xe0] sm:$0xff] %v479
      %614 = vst [vmem:[%s181 + $0xe8] sm:$0xff] %v481
      %615 = vst [vmem:[%s181 + $0xf0] sm:$0xff] %v485
      %616 = vst [vmem:[%s181 + $0xf8] sm:$0xff] %v487
      %617 = vst [vmem:[%s181 + $0x100] sm:$0xff] %v491
      %618 = vst [vmem:[%s181 + $0x108] sm:$0xff] %v493
      %619 = vst [vmem:[%s181 + $0x110] sm:$0xff] %v497
      %620 = vst [vmem:[%s181 + $0x118] sm:$0xff] %v499
      %621 = vst [vmem:[%s181 + $0x120] sm:$0xff] %v503
      %622 = vst [vmem:[%s181 + $0x128] sm:$0xff] %v505
      %623 = vst [vmem:[%s181 + $0x130] sm:$0xff] %v509
      %624 = vst [vmem:[%s181 + $0x138] sm:$0xff] %v511
      %625 = vst [vmem:[%s181 + $0x140] sm:$0xff] %v515
      %626 = vst [vmem:[%s181 + $0x148] sm:$0xff] %v517
      %627 = vst [vmem:[%s181 + $0x150] sm:$0xff] %v521
      %628 = vst [vmem:[%s181 + $0x158] sm:$0xff] %v523
      %629 = vst [vmem:[%s181 + $0x160] sm:$0xff] %v527
      %630 = vst [vmem:[%s181 + $0x168] sm:$0xff] %v529
      %631 = vst [vmem:[%s181 + $0x170] sm:$0xff] %v533
      %632 = vst [vmem:[%s181 + $0x178] sm:$0xff] %v535
      %633 = vst [vmem:[%s181 + $0x180] sm:$0xff] %v539
      %634 = vst [vmem:[%s181 + $0x188] sm:$0xff] %v541
      %635 = vst [vmem:[%s181 + $0x190] sm:$0xff] %v545
      %636 = vst [vmem:[%s181 + $0x198] sm:$0xff] %v547
      %637 = vst [vmem:[%s181 + $0x1a0] sm:$0xff] %v551
      %638 = vst [vmem:[%s181 + $0x1a8] sm:$0xff] %v553
      %639 = vst [vmem:[%s181 + $0x1b0] sm:$0xff] %v557
      %640 = vst [vmem:[%s181 + $0x1b8] sm:$0xff] %v559
      %641 = vst [vmem:[%s181 + $0x1c0] sm:$0xff] %v563
      %642 = vst [vmem:[%s181 + $0x1c8] sm:$0xff] %v565
      %643 = vst [vmem:[%s181 + $0x1d0] sm:$0xff] %v569
      %644 = vst [vmem:[%s181 + $0x1d8] sm:$0xff] %v571
      %645 = vst [vmem:[%s181 + $0x1e0] sm:$0xff] %v575
      %646 = vst [vmem:[%s181 + $0x1e8] sm:$0xff] %v577
      %647 = vst [vmem:[%s181 + $0x1f0] sm:$0xff] %v581
      %648 = vst [vmem:[%s181 + $0x1f8] sm:$0xff] %v583
      %s649 = smul.u32 2, %s18
      %p650 = scmp.lt.s32.totalorder %s17, 1
      %s651 = scalar_select %p650, %s17, 1
      %p652 = scmp.lt.s32.totalorder %s649, 1
      %s653 = scalar_select %p652, %s649, 1
      %s654 = smul.addr %s651, 64
      %s655 = sadd.s32 %s653, %s654
      %s656 = smul.addr %s655, 8
      %s657 = scalar_lea.vmem %s2, %s656
      // Predicated region
      $region29: #{upsample_with_pixel_shuffle.1} parent=27 // pred_check
        %p658 = pneg %p94
      $region30: #{upsample_with_pixel_shuffle.1} parent=27 // pred_check_branch
        %660 = sbr.rel (%p658) target = $region32
      $region31: #{upsample_with_pixel_shuffle.1} parent=27 // pred_region
        %s661 = smul.u32 2, %s18
      $region32: #{upsample_with_pixel_shuffle.1} parent=27 // pred_fallthru
        _
    $region28: #{upsample_with_pixel_shuffle.1} parent=5 // pred_fallthru
      _
    %p662 = scmp.le.s32.totalorder 2, %s8
    // Predicated region
    $region33: #{upsample_with_pixel_shuffle.1} parent=5 // pred_check
      %p663 = pneg %p662
    $region34: #{upsample_with_pixel_shuffle.1} parent=5 // pred_check_branch
      %665 = sbr.rel (%p663) target = $region36
    $region35: #{upsample_with_pixel_shuffle.1} parent=5 // pred_region
      %s666 = ssub.s32 %s8, 2
      // Predicated region
      $region37: #{upsample_with_pixel_shuffle.1} parent=35 // pred_check
        %p667 = pneg %p100
      $region38: #{upsample_with_pixel_shuffle.1} parent=35 // pred_check_branch
        %669 = sbr.rel (%p667) target = $region40
      $region39: #{upsample_with_pixel_shuffle.1} parent=35 // pred_region
        %s670 = smul.u32 2, %s20
        %p671 = scmp.lt.s32.totalorder %s19, 1
        %s672 = scalar_select %p671, %s19, 1
        %p673 = scmp.lt.s32.totalorder %s670, 1
        %s674 = scalar_select %p673, %s670, 1
        %s675 = smul.addr %s672, 64
        %s676 = sadd.s32 %s674, %s675
        %s677 = smul.addr %s676, 8
        %s678 = scalar_lea.vmem %s2, %s677
      $region40: #{upsample_with_pixel_shuffle.1} parent=35 // pred_fallthru
        _
    $region36: #{upsample_with_pixel_shuffle.1} parent=5 // pred_fallthru
      _
  $region6: #{upsample_with_pixel_shuffle.1} parent=0 // loop_footer
    %s12 = sadd.s32 1, %s8
  $region7: #{upsample_with_pixel_shuffle.1} parent=0 // loop_footer_branch
    %7 = sbr.rel target = $region3
  $region8: #{upsample_with_pixel_shuffle.1} parent=0 // loop_exit
    _

</llo_original>
